<compile_context>
chip_gen: v5e
topology: v5e:2x2
jax: 0.10.0
libtpu: 0.0.40
codegen_flags: <defaults>
</compile_context>

<pallas_src>
import functools
import math

import jax
import jax.numpy as jnp
from jax.experimental import pallas as pl
from jax.experimental.pallas import tpu as pltpu


def _device_kind():
    try:
        return jax.devices()[0].device_kind.lower()
    except Exception:
        return ""


_KIND = _device_kind()
# v5e/v6e have 128 MiB VMEM per TensorCore; v7x only 64 MiB -> stay conservative there/unknown.
_SMALL_VMEM = not any(g in _KIND for g in ("v5", "v6"))
_VMEM_LIMIT_BYTES = (32 if _SMALL_VMEM else 64) * 1024 * 1024

_TM = 256                       # row tile target
_TN = 256 if _SMALL_VMEM else 512   # bigger N tiles on v5e/v6e (128 MiB VMEM) amortize step overhead
_TK = 512


def _round_up(x, m):
    return (x + m - 1) // m * m


def _row_tile(m, target=_TM):
    """Row tile: `target` for big M (M padded up to a multiple), else M rounded to sublane (8)."""
    return target if m >= target else _round_up(m, 8)


def _col_tile(dim, target):
    """Largest 128-aligned tile <= target dividing dim, else the full dim (small/demo shapes)."""
    for t in (target, 512, 256, 128):
        if t <= dim and dim % t == 0:
            return t
    return dim


def _q_tile(s, target=256):
    if s <= target:
        return s
    for t in (target, 128, 64):
        if s % t == 0:
            return t
    return s


def _pad_rows(x, mp):
    if x.shape[0] == mp:
        return x
    pad = [(0, mp - x.shape[0])] + [(0, 0)] * (x.ndim - 1)
    return jnp.pad(x, pad)


# ----------------------------- generic tiled matmul -----------------------------

def _matmul_kernel(x_ref, w_ref, b_ref, o_ref, acc_ref, *, activation):
    @pl.when(pl.program_id(2) == 0)
    def _init():
        acc_ref[...] = jnp.zeros_like(acc_ref)

    acc_ref[...] += jnp.dot(x_ref[...].astype(jnp.bfloat16), w_ref[...],
                            preferred_element_type=jnp.float32)

    @pl.when(pl.program_id(2) == pl.num_programs(2) - 1)
    def _fin():
        y = acc_ref[...] + b_ref[...]
        if activation == "gelu":
            # TODO(synk): HF BERT uses the exact erf GELU; tanh approx kept for guaranteed EUP lowering.
            y = jax.nn.gelu(y, approximate=True)
        o_ref[...] = y.astype(o_ref.dtype)


def linear(x, w, b, activation=None, *, out_dtype=jnp.bfloat16, tm=_TM, tn=_TN, tk=_TK):
    """x: (M, K) @ w: (K, N) + b: (N,) -> (M, N). M padded to the row tile; K is the reduction axis."""
    M, K = x.shape
    K2, N = w.shape
    assert K == K2
    tm = _row_tile(M, tm)
    Mp = _round_up(M, tm)
    tn = _col_tile(N, tn)
    tk = _col_tile(K, tk)
    out = pl.pallas_call(
        functools.partial(_matmul_kernel, activation=activation),
        grid=(Mp // tm, N // tn, K // tk),
        in_specs=[
            pl.BlockSpec((tm, tk), lambda i, j, k: (i, k)),
            pl.BlockSpec((tk, tn), lambda i, j, k: (k, j)),
            pl.BlockSpec((1, tn), lambda i, j, k: (0, j)),
        ],
        out_specs=pl.BlockSpec((tm, tn), lambda i, j, k: (i, j)),
        out_shape=jax.ShapeDtypeStruct((Mp, N), out_dtype),
        scratch_shapes=[pltpu.VMEM((tm, tn), jnp.float32)],
        compiler_params=pltpu.CompilerParams(
            dimension_semantics=("parallel", "parallel", "arbitrary"),
            vmem_limit_bytes=_VMEM_LIMIT_BYTES),
    )(_pad_rows(x, Mp), w, b.reshape(1, N))
    return out[:M] if Mp != M else out


# ------------------- fused multi-head attention (batch x query-tile grid) -------------------

def _mha_kernel(q_ref, k_ref, v_ref, bias_ref, o_ref, ctx_ref, *, heads, head_dim, scale):
    q = q_ref[0]                                  # (tq, H) bf16 -- no full-block f32 upcast
    k = k_ref[0]                                  # (S,  H) bf16
    v = v_ref[0]                                  # (S,  H) bf16
    bias = bias_ref[0]                            # (1,  S) f32 additive key mask

    # TODO(synk): per-head loop keeps K=head_dim MXU contractions; head-batched dot_general
    # (heads as a batch dim) would fill the 256-deep MXU better on v6e/v7x.
    for h in range(heads):                        # static unroll over heads
        sl = slice(h * head_dim, (h + 1) * head_dim)
        s = jax.lax.dot_general(q[:, sl], k[:, sl], (((1,), (1,)), ((), ())),
                                preferred_element_type=jnp.float32)      # (tq, S)
        s = s * scale + bias
        m = jnp.max(s, axis=-1, keepdims=True)
        p = jnp.exp(s - m)
        p = p / jnp.sum(p, axis=-1, keepdims=True)                       # exact normalization
        ctx_ref[:, sl] = jnp.dot(p.astype(jnp.bfloat16), v[:, sl],
                                 preferred_element_type=jnp.float32)     # (tq, dh) into scratch

    # single lane-dense HBM-facing store of the merged (tq, H) context
    o_ref[0] = ctx_ref[...].astype(o_ref.dtype)


def mha(q, k, v, bias, *, heads):
    """q/k/v: (B, S, H) bf16; bias: (B, 1, S) additive mask -> (B, S, H) bf16."""
    B, S, H = q.shape
    dh = H // heads
    tq = _q_tile(S)
    return pl.pallas_call(
        functools.partial(_mha_kernel, heads=heads, head_dim=dh, scale=1.0 / math.sqrt(dh)),
        grid=(B, S // tq),
        in_specs=[
            pl.BlockSpec((1, tq, H), lambda b, qi: (b, qi, 0)),
            pl.BlockSpec((1, S, H), lambda b, qi: (b, 0, 0)),
            pl.BlockSpec((1, S, H), lambda b, qi: (b, 0, 0)),
            pl.BlockSpec((1, 1, S), lambda b, qi: (b, 0, 0)),
        ],
        out_specs=pl.BlockSpec((1, tq, H), lambda b, qi: (b, qi, 0)),
        out_shape=jax.ShapeDtypeStruct((B, S, H), jnp.bfloat16),
        scratch_shapes=[pltpu.VMEM((tq, H), jnp.float32)],
        compiler_params=pltpu.CompilerParams(
            dimension_semantics=("parallel", "parallel"),
            vmem_limit_bytes=_VMEM_LIMIT_BYTES),
    )(q, k, v, bias)


# ------------- matmul + bias + residual + LayerNorm (attention output proj) -------------

def _matmul_res_ln_kernel(x_ref, w_ref, b_ref, res_ref, g_ref, beta_ref, o_ref, acc_ref, *, eps):
    @pl.when(pl.program_id(1) == 0)
    def _init():
        acc_ref[...] = jnp.zeros_like(acc_ref)

    acc_ref[...] += jnp.dot(x_ref[...].astype(jnp.bfloat16), w_ref[...],
                            preferred_element_type=jnp.float32)

    @pl.when(pl.program_id(1) == pl.num_programs(1) - 1)
    def _fin():
        y = acc_ref[...] + b_ref[...] + res_ref[...].astype(jnp.float32)
        mu = jnp.mean(y, axis=-1, keepdims=True)
        var = jnp.mean(jnp.square(y - mu), axis=-1, keepdims=True)
        y = (y - mu) * jax.lax.rsqrt(var + eps)
        o_ref[...] = (y * g_ref[...] + beta_ref[...]).astype(o_ref.dtype)


def linear_residual_layernorm(x, w, b, residual, gamma, beta, *, eps=1e-12, tm=_TM, tk=_TK):
    M, K = x.shape
    K2, H = w.shape
    assert K == K2
    tm = _row_tile(M, tm)
    Mp = _round_up(M, tm)
    tk = _col_tile(K, tk)
    out = pl.pallas_call(
        functools.partial(_matmul_res_ln_kernel, eps=eps),
        grid=(Mp // tm, K // tk),
        in_specs=[
            pl.BlockSpec((tm, tk), lambda i, k: (i, k)),
            pl.BlockSpec((tk, H), lambda i, k: (k, 0)),
            pl.BlockSpec((1, H), lambda i, k: (0, 0)),
            pl.BlockSpec((tm, H), lambda i, k: (i, 0)),
            pl.BlockSpec((1, H), lambda i, k: (0, 0)),
            pl.BlockSpec((1, H), lambda i, k: (0, 0)),
        ],
        out_specs=pl.BlockSpec((tm, H), lambda i, k: (i, 0)),
        out_shape=jax.ShapeDtypeStruct((Mp, H), jnp.bfloat16),
        scratch_shapes=[pltpu.VMEM((tm, H), jnp.float32)],
        compiler_params=pltpu.CompilerParams(
            dimension_semantics=("parallel", "arbitrary"),
            vmem_limit_bytes=_VMEM_LIMIT_BYTES),
    )(_pad_rows(x, Mp), w, b.reshape(1, H), _pad_rows(residual, Mp),
      gamma.reshape(1, H), beta.reshape(1, H))
    return out[:M] if Mp != M else out


# ------------- fused FFN (H->F gelu, F->H as F-chunked reduction) + residual + LayerNorm -------------

def _ffn_res_ln_kernel(x_ref, w1_ref, b1_ref, w2_ref, b2_ref, g_ref, beta_ref, o_ref,
                       acc_ref, *, eps):
    @pl.when(pl.program_id(1) == 0)
    def _init():
        acc_ref[...] = jnp.zeros_like(acc_ref)

    x = x_ref[...].astype(jnp.bfloat16)                                       # (tm, H)
    h = jnp.dot(x, w1_ref[...], preferred_element_type=jnp.float32) + b1_ref[...]   # (tm, tf)
    # TODO(synk): HF BERT uses the exact erf GELU; tanh approx kept for guaranteed EUP lowering.
    h = jax.nn.gelu(h, approximate=True)
    acc_ref[...] += jnp.dot(h.astype(jnp.bfloat16), w2_ref[...],
                            preferred_element_type=jnp.float32)               # (tm, H)

    @pl.when(pl.program_id(1) == pl.num_programs(1) - 1)
    def _fin():
        y = acc_ref[...] + b2_ref[...] + x_ref[...].astype(jnp.float32)
        mu = jnp.mean(y, axis=-1, keepdims=True)
        var = jnp.mean(jnp.square(y - mu), axis=-1, keepdims=True)
        y = (y - mu) * jax.lax.rsqrt(var + eps)
        o_ref[...] = (y * g_ref[...] + beta_ref[...]).astype(o_ref.dtype)


def ffn_residual_layernorm(x, w1, b1, w2, b2, gamma, beta, *, eps=1e-12, tm=_TM, tf=_TN):
    M, H = x.shape
    H2, F = w1.shape
    assert H == H2 and w2.shape == (F, H)
    tm = _row_tile(M, tm)
    Mp = _round_up(M, tm)
    tf = _col_tile(F, tf)
    out = pl.pallas_call(
        functools.partial(_ffn_res_ln_kernel, eps=eps),
        grid=(Mp // tm, F // tf),
        in_specs=[
            pl.BlockSpec((tm, H), lambda i, f: (i, 0)),
            pl.BlockSpec((H, tf), lambda i, f: (0, f)),    # F is chunked: weights never fully resident
            pl.BlockSpec((1, tf), lambda i, f: (0, f)),
            pl.BlockSpec((tf, H), lambda i, f: (f, 0)),
            pl.BlockSpec((1, H), lambda i, f: (0, 0)),
            pl.BlockSpec((1, H), lambda i, f: (0, 0)),
            pl.BlockSpec((1, H), lambda i, f: (0, 0)),
        ],
        out_specs=pl.BlockSpec((tm, H), lambda i, f: (i, 0)),
        out_shape=jax.ShapeDtypeStruct((Mp, H), jnp.bfloat16),
        scratch_shapes=[pltpu.VMEM((tm, H), jnp.float32)],
        compiler_params=pltpu.CompilerParams(
            dimension_semantics=("parallel", "arbitrary"),
            vmem_limit_bytes=_VMEM_LIMIT_BYTES),
    )(_pad_rows(x, Mp), w1, b1.reshape(1, F), w2, b2.reshape(1, H),
      gamma.reshape(1, H), beta.reshape(1, H))
    return out[:M] if Mp != M else out


# ----------------------------- plain LayerNorm (embeddings) -----------------------------

def _ln_kernel(x_ref, g_ref, b_ref, o_ref, *, eps):
    x = x_ref[...].astype(jnp.float32)
    mu = jnp.mean(x, axis=-1, keepdims=True)
    var = jnp.mean(jnp.square(x - mu), axis=-1, keepdims=True)
    y = (x - mu) * jax.lax.rsqrt(var + eps)
    o_ref[...] = (y * g_ref[...] + b_ref[...]).astype(o_ref.dtype)


def layernorm(x, gamma, beta, *, eps=1e-12, tm=_TM):
    M, H = x.shape
    tm = _row_tile(M, tm)
    Mp = _round_up(M, tm)
    out = pl.pallas_call(
        functools.partial(_ln_kernel, eps=eps),
        grid=(Mp // tm,),
        in_specs=[
            pl.BlockSpec((tm, H), lambda i: (i, 0)),
            pl.BlockSpec((1, H), lambda i: (0, 0)),
            pl.BlockSpec((1, H), lambda i: (0, 0)),
        ],
        out_specs=pl.BlockSpec((tm, H), lambda i: (i, 0)),
        out_shape=jax.ShapeDtypeStruct((Mp, H), jnp.bfloat16),
        compiler_params=pltpu.CompilerParams(
            dimension_semantics=("parallel",),
            vmem_limit_bytes=_VMEM_LIMIT_BYTES),
    )(_pad_rows(x, Mp), gamma.reshape(1, H), beta.reshape(1, H))
    return out[:M] if Mp != M else out


# --------------------------- model (glue + params) ---------------------------

def init_params(key, *, vocab, type_vocab, max_pos, hidden, ffn, layers, class_num):
    def nrm(k, shape):
        return 0.02 * jax.random.normal(k, shape, dtype=jnp.float32)

    keys = iter(jax.random.split(key, 4 + layers * 4))
    class_pad = max(128, _round_up(class_num, 128))          # pad fc to a 128-lane block ONCE
    fc_w = jnp.zeros((hidden, class_pad), jnp.float32).at[:, :class_num].set(
        nrm(next(keys), (hidden, class_num)))
    p = {
        "word_emb": nrm(next(keys), (vocab, hidden)),
        "type_emb": nrm(next(keys), (type_vocab, hidden)),
        "pos_emb": nrm(next(keys), (max_pos, hidden)),
        "emb_ln_g": jnp.ones((hidden,), jnp.float32),
        "emb_ln_b": jnp.zeros((hidden,), jnp.float32),
        "fc_w": fc_w.astype(jnp.bfloat16),                   # matmul weights pre-cast to bf16
        "fc_b": jnp.zeros((class_pad,), jnp.float32),
        "class_num": class_num,
        "layers": [],
    }
    for _ in range(layers):
        lyr = {
            # fused QKV projection weights (wq | wk | wv), bf16 for the MXU
            "w_qkv": nrm(next(keys), (hidden, 3 * hidden)).astype(jnp.bfloat16),
            "b_qkv": jnp.zeros((3 * hidden,), jnp.float32),
            "wo": nrm(next(keys), (hidden, hidden)).astype(jnp.bfloat16),
            "bo": jnp.zeros((hidden,), jnp.float32),
            "ln1_g": jnp.ones((hidden,), jnp.float32), "ln1_b": jnp.zeros((hidden,), jnp.float32),
            "w1": nrm(next(keys), (hidden, ffn)).astype(jnp.bfloat16),
            "b1": jnp.zeros((ffn,), jnp.float32),
            "w2": nrm(next(keys), (ffn, hidden)).astype(jnp.bfloat16),
            "b2": jnp.zeros((hidden,), jnp.float32),
            "ln2_g": jnp.ones((hidden,), jnp.float32), "ln2_b": jnp.zeros((hidden,), jnp.float32),
        }
        p["layers"].append(lyr)
    return p


def bert_softmax_forward(params, input_ids, token_type_ids, attention_mask, *, heads):
    B, S = input_ids.shape
    H = params["word_emb"].shape[1]
    M = B * S

    # --- embeddings (gather is host glue) + embedding LayerNorm (Pallas) ---
    emb = (jnp.take(params["word_emb"], input_ids, axis=0)
           + jnp.take(params["type_emb"], token_type_ids, axis=0)
           + params["pos_emb"][None, :S, :])                        # (B, S, H) f32
    x = layernorm(emb.reshape(M, H), params["emb_ln_g"], params["emb_ln_b"])  # (M, H) bf16

    # additive attention bias (B, 1, S): 0 for real tokens, -10000 for padding
    bias = ((1.0 - attention_mask.astype(jnp.float32)) * -10000.0).reshape(B, 1, S)

    for lyr in params["layers"]:
        # 4 Pallas kernels per layer: fused QKV matmul, fused MHA, out-proj+LN, fused FFN+LN
        qkv = linear(x, lyr["w_qkv"], lyr["b_qkv"]).reshape(B, S, 3 * H)       # bf16
        q, k, v = qkv[..., :H], qkv[..., H:2 * H], qkv[..., 2 * H:]            # cheap host slices
        ctx = mha(q, k, v, bias, heads=heads).reshape(M, H)                    # bf16
        x = linear_residual_layernorm(ctx, lyr["wo"], lyr["bo"], x, lyr["ln1_g"], lyr["ln1_b"])
        x = ffn_residual_layernorm(x, lyr["w1"], lyr["b1"], lyr["w2"], lyr["b2"],
                                   lyr["ln2_g"], lyr["ln2_b"])

    # --- dropout (eval mode => identity) + fc classifier head (weights pre-padded to 128 lanes) ---
    # TODO(synk): training-mode dropout (p=0.1) via pltpu.prng_random_bits if training semantics needed.
    C = params["class_num"]
    logits = linear(x, params["fc_w"], params["fc_b"], out_dtype=jnp.float32)[:, :C]
    return logits.reshape(B, S, C)


# ----------------------------------- main -----------------------------------

if __name__ == "__main__":
    B, S = 2, 8
    HIDDEN, HEADS, FFN, LAYERS = 32, 4, 64, 2
    VOCAB, TYPE_VOCAB, MAX_POS = 100, 2, 16
    CLASS_NUM = 8

    key = jax.random.PRNGKey(0)
    k_param, k_ids = jax.random.split(key)

    params = init_params(k_param, vocab=VOCAB, type_vocab=TYPE_VOCAB, max_pos=MAX_POS,
                         hidden=HIDDEN, ffn=FFN, layers=LAYERS, class_num=CLASS_NUM)

    input_ids = jax.random.randint(k_ids, (B, S), 0, VOCAB, dtype=jnp.int32)
    token_type_ids = jnp.zeros((B, S), dtype=jnp.int32)
    attention_mask = jnp.ones((B, S), dtype=jnp.int32).at[1, 6:].set(0)  # some padding in batch 1

    out = bert_softmax_forward(params, input_ids, token_type_ids, attention_mask, heads=HEADS)
    out = jax.block_until_ready(out)

    assert out.shape == (B, S, CLASS_NUM), out.shape
    assert out.dtype == jnp.float32
    assert bool(jnp.all(jnp.isfinite(out)))
    print("KERNEL_OK")
</pallas_src>

<mosaic_0001>
module attributes {stable_mosaic.version = 11 : i64} {
  func.func @_ln_kernel(%arg0: i32, %arg1: memref<16x32xf32, #tpu.memory_space<vmem>>, %arg2: memref<1x32xf32, #tpu.memory_space<vmem>>, %arg3: memref<1x32xf32, #tpu.memory_space<vmem>>, %arg4: memref<16x32xbf16, #tpu.memory_space<vmem>>) attributes {dimension_semantics = [#tpu.dimension_semantics<parallel>], iteration_bounds = array<i64: 1>, scalar_prefetch = 0 : i64, scratch_operands = 0 : i64, tpu.core_type = #tpu.core_type<tc>, window_params = [{transform_indices = @transform_0, window_bounds = array<i64: 16, 32>}, {pipeline_mode = #tpu.pipeline_mode<synchronous>, transform_indices = @transform_1, window_bounds = array<i64: 1, 32>}, {pipeline_mode = #tpu.pipeline_mode<synchronous>, transform_indices = @transform_2, window_bounds = array<i64: 1, 32>}, {transform_indices = @transform_3, window_bounds = array<i64: 16, 32>}]} {
    %c0 = arith.constant 0 : index
    %c0_0 = arith.constant 0 : index
    %0 = vector.load %arg1[%c0, %c0_0] : memref<16x32xf32, #tpu.memory_space<vmem>>, vector<16x32xf32>
    %cst = arith.constant dense<0.000000e+00> : vector<16xf32>
    %1 = vector.multi_reduction <add>, %0, %cst [1] : vector<16x32xf32> to vector<16xf32>
    %2 = vector.shape_cast %1 : vector<16xf32> to vector<16x1xf32>
    %cst_1 = arith.constant 3.200000e+01 : f32
    %3 = vector.broadcast %cst_1 : f32 to vector<16x1xf32>
    %4 = arith.divf %2, %3 : vector<16x1xf32>
    %5 = vector.broadcast %4 : vector<16x1xf32> to vector<16x32xf32>
    %6 = arith.subf %0, %5 : vector<16x32xf32>
    %7 = arith.mulf %6, %6 : vector<16x32xf32>
    %cst_2 = arith.constant dense<0.000000e+00> : vector<16xf32>
    %8 = vector.multi_reduction <add>, %7, %cst_2 [1] : vector<16x32xf32> to vector<16xf32>
    %9 = vector.shape_cast %8 : vector<16xf32> to vector<16x1xf32>
    %cst_3 = arith.constant 3.200000e+01 : f32
    %10 = vector.broadcast %cst_3 : f32 to vector<16x1xf32>
    %11 = arith.divf %9, %10 : vector<16x1xf32>
    %12 = vector.broadcast %4 : vector<16x1xf32> to vector<16x32xf32>
    %13 = arith.subf %0, %12 : vector<16x32xf32>
    %cst_4 = arith.constant 9.99999996E-13 : f32
    %14 = vector.broadcast %cst_4 : f32 to vector<16x1xf32>
    %15 = arith.addf %11, %14 : vector<16x1xf32>
    %16 = math.rsqrt %15 : vector<16x1xf32>
    %17 = vector.broadcast %16 : vector<16x1xf32> to vector<16x32xf32>
    %18 = arith.mulf %13, %17 : vector<16x32xf32>
    %c0_5 = arith.constant 0 : index
    %c0_6 = arith.constant 0 : index
    %19 = vector.load %arg2[%c0_5, %c0_6] : memref<1x32xf32, #tpu.memory_space<vmem>>, vector<1x32xf32>
    %20 = vector.broadcast %19 : vector<1x32xf32> to vector<16x32xf32>
    %21 = arith.mulf %18, %20 : vector<16x32xf32>
    %c0_7 = arith.constant 0 : index
    %c0_8 = arith.constant 0 : index
    %22 = vector.load %arg3[%c0_7, %c0_8] : memref<1x32xf32, #tpu.memory_space<vmem>>, vector<1x32xf32>
    %23 = vector.broadcast %22 : vector<1x32xf32> to vector<16x32xf32>
    %24 = arith.addf %21, %23 : vector<16x32xf32>
    %25 = arith.truncf %24 : vector<16x32xf32> to vector<16x32xbf16>
    %c0_9 = arith.constant 0 : index
    %c0_10 = arith.constant 0 : index
    %26 = vector.load %arg4[%c0_9, %c0_10] : memref<16x32xbf16, #tpu.memory_space<vmem>>, vector<16x32xbf16>
    tpu.vector_store %arg4[%c0_9, %c0_10], %25 {strides = array<i32>} : memref<16x32xbf16, #tpu.memory_space<vmem>>, vector<16x32xbf16>,
    return
  }
  func.func @transform_0(%arg0: i32) -> (i32, i32) {
    %c0_i32 = arith.constant 0 : i32
    %c0_i32_0 = arith.constant 0 : i32
    return %arg0, %c0_i32 : i32, i32
  }
  func.func @transform_1(%arg0: i32) -> (i32, i32) {
    %c0_i32 = arith.constant 0 : i32
    %c0_i32_0 = arith.constant 0 : i32
    %c0_i32_1 = arith.constant 0 : i32
    return %c0_i32, %c0_i32_0 : i32, i32
  }
  func.func @transform_2(%arg0: i32) -> (i32, i32) {
    %c0_i32 = arith.constant 0 : i32
    %c0_i32_0 = arith.constant 0 : i32
    %c0_i32_1 = arith.constant 0 : i32
    return %c0_i32, %c0_i32_0 : i32, i32
  }
  func.func @transform_3(%arg0: i32) -> (i32, i32) {
    %c0_i32 = arith.constant 0 : i32
    %c0_i32_0 = arith.constant 0 : i32
    return %arg0, %c0_i32 : i32, i32
  }
}

</mosaic_0001>

<llo_original>
// kernel: tpu_custom_call.1
$region0: #{tpu_custom_call.1}
  #allocation0 [shape = 'u32[]', space=smem, size = 0x4, offset = 0x4, fixed_abs, tag = 'smem constant byte address 0x4 - core index']
  #allocation1 [shape = 'u32[72,128]{1,0:T(1,128)}', space=vmem, size = 0x9000, scoped, tag = 'internal scratch']
  %s0 = inlined_call_operand.hbm [shape: f32[16,32], index: 0, kind: input, shape index: {}]
  %s1 = inlined_call_operand.hbm [shape: f32[1,32], index: 1, kind: input, shape index: {}]
  %s2 = inlined_call_operand.vmem [shape: f32[1,32], index: 2, kind: input, shape index: {}]
  %s3 = inlined_call_operand.hbm [shape: bf16[16,32], index: 3, kind: output, shape index: {}]
  %s4 = sld [smem:[#allocation0]]
  $region30: #{tpu_custom_call.1} parent=0
    _
  %s6 = ssub.s32 1, %s4
  %s7 = scalar_select 0, %s6, %s4
  $region1: #{tpu_custom_call.1} parent=0
    #allocation2 [shape = 'u8[8192]{0}', space=vmem, size = 0x2000, scoped, tag = 'input window, operand 0, single buffered']
    #allocation3 [shape = 's32[1]{0}', space=sflag, size = 0x4, scoped, tag = 'scoped memory for tpu_custom_call.1']
    #allocation4 [shape = 's32[1]{0}', space=sflag, size = 0x4, scoped, tag = 'scoped memory for tpu_custom_call.1']
    #allocation5 [shape = 'u8[512]{0}', space=vmem, size = 0x400, scoped, tag = 'input window, operand 1, single buffered']
    #allocation6 [shape = 's32[1]{0}', space=sflag, size = 0x4, scoped, tag = 'scoped memory for tpu_custom_call.1']
    #allocation7 [shape = 'u8[4096]{0}', space=vmem, size = 0x1000, scoped, tag = 'output window, operand 0, single buffered']
    %8 = vsyncpa [#allocation3], 0
    %9 = vsyncpa [#allocation6], 0
    %10 = vsyncpa [#allocation4], 0
    // Predicated region
    $region2: #{tpu_custom_call.1} parent=1 // pred_check
      _
    $region3: #{tpu_custom_call.1} parent=1 // pred_check_branch
      %12 = sbr.rel (0) target = $region5
    $region4: #{tpu_custom_call.1} parent=1 // pred_region
      %14 = vsyncadd [#allocation3], 0
      %s15 = sshll.u32 %s0, 4
      %s16 = int_to_ptr.hbm [resolvable:$true] %s15
      %s17 = sshll.u32 [#allocation2], 4
      %s18 = int_to_ptr.vmem [resolvable:$true] %s17
      %23 = dma.hbm_to_vmem [thread:$0]  %s16, 256, %s18, [#allocation3], 128, 128, 8
    $region5: #{tpu_custom_call.1} parent=1 // pred_fallthru
      _
    // Predicated region
    $region6: #{tpu_custom_call.1} parent=1 // pred_check
      _
    $region7: #{tpu_custom_call.1} parent=1 // pred_check_branch
      %25 = sbr.rel (0) target = $region9
    $region8: #{tpu_custom_call.1} parent=1 // pred_region
      %27 = vsyncadd [#allocation6], 0
      %s29 = sshll.u32 %s1, 4
      %s30 = int_to_ptr.hbm [resolvable:$true] %s29
      %s31 = sshll.u32 [#allocation5], 4
      %s32 = int_to_ptr.vmem [resolvable:$true] %s31
      %34 = dma.hbm_to_vmem [thread:$0]  %s30, 16, %s32, [#allocation6]
    $region9: #{tpu_custom_call.1} parent=1 // pred_fallthru
      _
    // Predicated region
    $region10: #{tpu_custom_call.1} parent=1 // pred_check
      _
    $region11: #{tpu_custom_call.1} parent=1 // pred_check_branch
      %36 = sbr.rel (0) target = $region13
    $region12: #{tpu_custom_call.1} parent=1 // pred_region
      _
    $region13: #{tpu_custom_call.1} parent=1 // pred_fallthru
      _
    // Predicated region
    $region14: #{tpu_custom_call.1} parent=1 // pred_check
      _
    $region15: #{tpu_custom_call.1} parent=1 // pred_check_branch
      %38 = sbr.rel (0) target = $region17
    $region16: #{tpu_custom_call.1} parent=1 // pred_region
      %40 = dma.done [#allocation3], 256
    $region17: #{tpu_custom_call.1} parent=1 // pred_fallthru
      _
    // Predicated region
    $region18: #{tpu_custom_call.1} parent=1 // pred_check
      _
    $region19: #{tpu_custom_call.1} parent=1 // pred_check_branch
      %42 = sbr.rel (0) target = $region21
    $region20: #{tpu_custom_call.1} parent=1 // pred_region
      %44 = dma.done [#allocation6], 16
    $region21: #{tpu_custom_call.1} parent=1 // pred_fallthru
      _
    %v45 = vld [vmem:[#allocation2] sm:$0xff]
    %v46 = vld [vmem:[#allocation2 + $0x8] sm:$0xff]
    %vm47 = vcmask 261120
    %v48 = vsel %vm47, %v45, 0.0
    %49 = vadd.xlane.f32.xlu0 %v48
    %v50 = vpop.xlane.xlu0 %49
    %v51 = vsel %vm47, %v46, 0.0
    %52 = vadd.xlane.f32.xlu0 %v51
    %v53 = vpop.xlane.xlu0 %52
    %v54 = vrcp.pop 32.0
    %v55 = vmul.f32 32.0, %v54
    %v56 = vsub.f32 1.0, %v55
    %v57 = vmul.f32 %v54, %v56
    %v58 = vadd.f32 %v54, %v57
    %vm59 = vweird.f32 %v54
    %v60 = vsel %vm59, %v54, %v58
    %v61 = vmul.f32 %v50, %v60
    %v62 = vmul.f32 %v53, %v60
    %v63 = vsub.f32 %v45, %v61
    %v64 = vsub.f32 %v46, %v62
    %v65 = vmul.f32 %v63, %v63
    %v66 = vmul.f32 %v64, %v64
    %v67 = vsel %vm47, %v65, 0.0
    %68 = vadd.xlane.f32.xlu0 %v67
    %v69 = vpop.xlane.xlu0 %68
    %v70 = vsel %vm47, %v66, 0.0
    %71 = vadd.xlane.f32.xlu0 %v70
    %v72 = vpop.xlane.xlu0 %71
    %v73 = vmul.f32 %v69, %v60
    %v74 = vmul.f32 %v72, %v60
    %v75 = vadd.f32 %v73, 1e-12
    %v76 = vadd.f32 %v74, 1e-12
    %v77 = vrsqrt.pop %v75
    %v78 = vmul.f32 %v77, %v75
    %v79 = vmul.f32 %v78, %v77
    %v80 = vmul.f32 0.5, %v79
    %v81 = vsub.f32 1.5, %v80
    %v82 = vmul.f32 %v77, %v81
    %vm83 = vweird.f32 %v75
    %vm84 = vweird.f32 %v77
    %vm85 = vmor %vm83, %vm84
    %v86 = vsel %vm85, %v77, %v82
    %v87 = vrsqrt.pop %v76
    %v88 = vmul.f32 %v87, %v76
    %v89 = vmul.f32 %v88, %v87
    %v90 = vmul.f32 0.5, %v89
    %v91 = vsub.f32 1.5, %v90
    %v92 = vmul.f32 %v87, %v91
    %vm93 = vweird.f32 %v76
    %vm94 = vweird.f32 %v87
    %vm95 = vmor %vm93, %vm94
    %v96 = vsel %vm95, %v87, %v92
    %v97 = vmul.f32 %v63, %v86
    %v98 = vmul.f32 %v64, %v96
    %v99 = vld [vmem:[#allocation5] sm:$0x1]
    %v101 = vperm.slane %v99, 0
    %v103 = vmul.f32 %v97, %v101
    %v104 = vmul.f32 %v98, %v101
    %v105 = vld [vmem:[%s2] sm:$0x1]
    %v107 = vperm.slane %v105, 0
    %v109 = vadd.f32 %v103, %v107
    %v110 = vadd.f32 %v104, %v107
    %v111 = vpack.c.bf16 %v109, %v109
    %v112 = vpack.c.bf16 %v110, %v110
    %vm113 = vcmask 257024
    %114 = vst.msk [vmem:[#allocation7] sm:$0xf] %vm113, %v111
    %115 = vst.msk [vmem:[#allocation7 + $0x4] sm:$0xf] %vm113, %v112
    // Predicated region
    $region22: #{tpu_custom_call.1} parent=1 // pred_check
      _
    $region23: #{tpu_custom_call.1} parent=1 // pred_check_branch
      %117 = sbr.rel (0) target = $region25
    $region24: #{tpu_custom_call.1} parent=1 // pred_region
      %119 = vsyncadd [#allocation4], 0
      %s120 = sshll.u32 [#allocation7], 4
      %s121 = int_to_ptr.vmem [resolvable:$true] %s120
      %s122 = sshll.u32 %s3, 4
      %s123 = int_to_ptr.hbm [resolvable:$true] %s122
      %128 = dma.vmem_to_hbm [thread:$0]  %s121, 128, %s123, [#allocation4], 64, 64, 4
    $region25: #{tpu_custom_call.1} parent=1 // pred_fallthru
      _
    // Predicated region
    $region26: #{tpu_custom_call.1} parent=1 // pred_check
      _
    $region27: #{tpu_custom_call.1} parent=1 // pred_check_branch
      %130 = sbr.rel (0) target = $region29
    $region28: #{tpu_custom_call.1} parent=1 // pred_region
      %132 = dma.done [#allocation4], 128
    $region29: #{tpu_custom_call.1} parent=1 // pred_fallthru
      _
    %133 = vsyncpa [#allocation3], 1
    %134 = vsyncpa [#allocation6], 1
    %135 = vsyncpa [#allocation4], 1

</llo_original>
